<compile_context>
chip_gen: v6e
topology: v6e:2x2x1
jax: 0.10.0
libtpu: 0.0.40
codegen_flags: <defaults>
</compile_context>

<pallas_src>
import math
from functools import partial

import jax
import jax.numpy as jnp
from jax.experimental import pallas as pl
from jax.experimental.pallas import tpu as pltpu


def _gn_conv_kernel(xc_ref, w_ref, g_ref, b_ref, o_ref, *, K, TB, T_out, C):
    # xc_ref: (TB, K, T_pad)  im2col'd input, time last, zero-padded past T_out
    # w_ref:  (K, C, 1)       conv taps (sublane-major per tap)
    # g_ref:  (C, 1)          GroupNorm gamma
    # b_ref:  (C, 1)          GroupNorm beta
    # o_ref:  (TB, C, T_pad)  lane-dense output block
    w = w_ref[...]                       # hoist small parameter loads once
    gamma = g_ref[...]                   # (C, 1)
    beta = b_ref[...]                    # (C, 1)
    inv_n = jnp.float32(1.0 / T_out)
    gelu_c = jnp.float32(math.sqrt(2.0 / math.pi))

    for b in range(TB):                  # static unroll, TB is small (<= 8)
        # ---- Conv1d (in_channels=1, no bias): K broadcast-FMAs on the VPU ----
        acc = w[0] * xc_ref[b, 0, :][None, :]            # (C, T_pad)
        for k in range(1, K):
            acc = acc + w[k] * xc_ref[b, k, :][None, :]

        # ---- Dropout(p=0.0) is the identity ----

        # ---- GroupNorm (groups == channels): one-pass stats over real T_out.
        #      Padded time columns are exactly zero -> contribute nothing to the
        #      sums; divide by the true T_out.
        s = jnp.sum(acc, axis=1, keepdims=True) * inv_n          # mean   (C, 1)
        ss = jnp.sum(acc * acc, axis=1, keepdims=True) * inv_n   # E[x^2] (C, 1)
        var = jnp.maximum(ss - s * s, 0.0)
        y = (acc - s) * jax.lax.rsqrt(var + 1e-5)
        y = y * gamma + beta

        # ---- tanh-approx GELU ----
        y = 0.5 * y * (1.0 + jnp.tanh(gelu_c * (y + 0.044715 * y * y * y)))

        o_ref[b, :, :] = y


def group_norm_conv_layer(x, w, gamma, beta, stride):
    """x: (B, 1, T), w: (C, 1, K), gamma/beta: (C,) -> (B, C, T_out) float32 (NCW)."""
    B, Cin, T = x.shape
    assert Cin == 1
    C, _, K = w.shape
    assert T >= K, "input time axis shorter than the conv kernel"
    T_out = (T - K) // stride + 1
    T_pad = ((T_out + 127) // 128) * 128          # lane-dense compute/store width

    if x.dtype != jnp.float32:
        x = x.astype(jnp.float32)
    x1 = x[:, 0, :]                                # (B, T)

    # im2col / polyphase gather in the wrapper: xcols[b, k, t] = x[b, 0, k + t*stride]
    last = (T_out - 1) * stride
    cols = [x1[:, k:k + last + 1:stride] for k in range(K)]      # each (B, T_out)
    xcols = jnp.stack(cols, axis=1)                              # (B, K, T_out)
    xcols = jnp.pad(xcols, ((0, 0), (0, 0), (0, T_pad - T_out)))  # zero time pad

    # Batch tiling: fill sublanes for large B, keep >=2 grid blocks for v7x's 2 TCs.
    if B >= 16:
        TB = 8
    else:
        TB = max(1, B // 2)
    B_pad = ((B + TB - 1) // TB) * TB
    if B_pad > B:
        xcols = jnp.pad(xcols, ((0, B_pad - B), (0, 0), (0, 0)))

    # Pre-shaped parameters: no in-kernel transposes / lane extracts needed.
    w2 = jnp.transpose(w[:, 0, :], (1, 0))[:, :, None].astype(jnp.float32)  # (K, C, 1)
    g2 = gamma.reshape(C, 1).astype(jnp.float32)
    b2 = beta.reshape(C, 1).astype(jnp.float32)

    kernel = partial(_gn_conv_kernel, K=K, TB=TB, T_out=T_out, C=C)
    out = pl.pallas_call(
        kernel,
        out_shape=jax.ShapeDtypeStruct((B_pad, C, T_pad), jnp.float32),
        grid=(B_pad // TB,),
        in_specs=[
            pl.BlockSpec((TB, K, T_pad), lambda i: (i, 0, 0)),   # im2col'd input
            pl.BlockSpec((K, C, 1), lambda i: (0, 0, 0)),        # conv taps (shared)
            pl.BlockSpec((C, 1), lambda i: (0, 0)),              # gamma
            pl.BlockSpec((C, 1), lambda i: (0, 0)),              # beta
        ],
        out_specs=pl.BlockSpec((TB, C, T_pad), lambda i: (i, 0, 0)),
        compiler_params=pltpu.CompilerParams(
            dimension_semantics=("parallel",)),
    )(xcols, w2, g2, b2)
    return out[:B, :, :T_out]


def _reference(x, w, gamma, beta, stride):
    # Pure-JAX reference matching the PyTorch forward.
    y = jax.lax.conv_general_dilated(
        x, w, window_strides=(stride,), padding="VALID",
        dimension_numbers=("NCH", "OIH", "NCH"))
    mean = y.mean(axis=2, keepdims=True)
    var = ((y - mean) ** 2).mean(axis=2, keepdims=True)
    yn = (y - mean) / jnp.sqrt(var + 1e-5)
    yn = yn * gamma[None, :, None] + beta[None, :, None]
    c = math.sqrt(2.0 / math.pi)
    return 0.5 * yn * (1.0 + jnp.tanh(c * (yn + 0.044715 * yn ** 3)))


if __name__ == "__main__":
    # Small config: no_filters=8, conv_kernel=3, conv_stride=2, batch=2, T=33.
    B, C, K, S, T = 2, 8, 3, 2, 33

    key = jax.random.PRNGKey(0)
    kx, kw, kg, kb = jax.random.split(key, 4)
    x = jax.random.normal(kx, (B, 1, T), dtype=jnp.float32)
    w = jax.random.normal(kw, (C, 1, K), dtype=jnp.float32) * (1.0 / math.sqrt(K))
    gamma = 1.0 + 0.1 * jax.random.normal(kg, (C,), dtype=jnp.float32)
    beta = 0.1 * jax.random.normal(kb, (C,), dtype=jnp.float32)

    out = group_norm_conv_layer(x, w, gamma, beta, S)
    out = jax.block_until_ready(out)

    ref = _reference(x, w, gamma, beta, S)
    assert out.shape == ref.shape, (out.shape, ref.shape)
    assert jnp.allclose(out, ref, atol=1e-4, rtol=1e-4), float(
        jnp.max(jnp.abs(out - ref)))

    print("KERNEL_OK")
</pallas_src>

<mosaic_0001>
module attributes {stable_mosaic.version = 11 : i64} {
  func.func @_gn_conv_kernel(%arg0: i32, %arg1: memref<1x3x128xf32, #tpu.memory_space<vmem>>, %arg2: memref<3x8x1xf32, #tpu.memory_space<vmem>>, %arg3: memref<8x1xf32, #tpu.memory_space<vmem>>, %arg4: memref<8x1xf32, #tpu.memory_space<vmem>>, %arg5: memref<1x8x128xf32, #tpu.memory_space<vmem>>) attributes {dimension_semantics = [#tpu.dimension_semantics<parallel>], iteration_bounds = array<i64: 2>, scalar_prefetch = 0 : i64, scratch_operands = 0 : i64, tpu.core_type = #tpu.core_type<tc>, window_params = [{transform_indices = @transform_0, window_bounds = array<i64: 1, 3, 128>}, {pipeline_mode = #tpu.pipeline_mode<synchronous>, transform_indices = @transform_1, window_bounds = array<i64: 3, 8, 1>}, {pipeline_mode = #tpu.pipeline_mode<synchronous>, transform_indices = @transform_2, window_bounds = array<i64: 8, 1>}, {pipeline_mode = #tpu.pipeline_mode<synchronous>, transform_indices = @transform_3, window_bounds = array<i64: 8, 1>}, {transform_indices = @transform_4, window_bounds = array<i64: 1, 8, 128>}]} {
    %c0 = arith.constant 0 : index
    %c0_0 = arith.constant 0 : index
    %c0_1 = arith.constant 0 : index
    %0 = vector.load %arg2[%c0, %c0_0, %c0_1] : memref<3x8x1xf32, #tpu.memory_space<vmem>>, vector<3x8x1xf32>
    %c0_2 = arith.constant 0 : index
    %c0_3 = arith.constant 0 : index
    %1 = vector.load %arg3[%c0_2, %c0_3] : memref<8x1xf32, #tpu.memory_space<vmem>>, vector<8x1xf32>
    %c0_4 = arith.constant 0 : index
    %c0_5 = arith.constant 0 : index
    %2 = vector.load %arg4[%c0_4, %c0_5] : memref<8x1xf32, #tpu.memory_space<vmem>>, vector<8x1xf32>
    %3 = vector.extract_strided_slice %0 {offsets = [0, 0, 0], sizes = [1, 8, 1], strides = [1, 1, 1]} : vector<3x8x1xf32> to vector<1x8x1xf32>
    %4 = vector.shape_cast %3 : vector<1x8x1xf32> to vector<8x1xf32>
    %c0_6 = arith.constant 0 : index
    %c0_7 = arith.constant 0 : index
    %c0_8 = arith.constant 0 : index
    %5 = vector.load %arg1[%c0_6, %c0_7, %c0_8] : memref<1x3x128xf32, #tpu.memory_space<vmem>>, vector<1x1x128xf32>
    %6 = vector.shape_cast %5 : vector<1x1x128xf32> to vector<128xf32>
    %7 = vector.shape_cast %6 : vector<128xf32> to vector<1x128xf32>
    %8 = vector.broadcast %4 : vector<8x1xf32> to vector<8x128xf32>
    %9 = vector.broadcast %7 : vector<1x128xf32> to vector<8x128xf32>
    %10 = arith.mulf %8, %9 : vector<8x128xf32>
    %11 = vector.extract_strided_slice %0 {offsets = [1, 0, 0], sizes = [1, 8, 1], strides = [1, 1, 1]} : vector<3x8x1xf32> to vector<1x8x1xf32>
    %12 = vector.shape_cast %11 : vector<1x8x1xf32> to vector<8x1xf32>
    %c0_9 = arith.constant 0 : index
    %c1 = arith.constant 1 : index
    %c0_10 = arith.constant 0 : index
    %13 = vector.load %arg1[%c0_9, %c1, %c0_10] : memref<1x3x128xf32, #tpu.memory_space<vmem>>, vector<1x1x128xf32>
    %14 = vector.shape_cast %13 : vector<1x1x128xf32> to vector<128xf32>
    %15 = vector.shape_cast %14 : vector<128xf32> to vector<1x128xf32>
    %16 = vector.broadcast %12 : vector<8x1xf32> to vector<8x128xf32>
    %17 = vector.broadcast %15 : vector<1x128xf32> to vector<8x128xf32>
    %18 = arith.mulf %16, %17 : vector<8x128xf32>
    %19 = arith.addf %10, %18 : vector<8x128xf32>
    %20 = vector.extract_strided_slice %0 {offsets = [2, 0, 0], sizes = [1, 8, 1], strides = [1, 1, 1]} : vector<3x8x1xf32> to vector<1x8x1xf32>
    %21 = vector.shape_cast %20 : vector<1x8x1xf32> to vector<8x1xf32>
    %c0_11 = arith.constant 0 : index
    %c2 = arith.constant 2 : index
    %c0_12 = arith.constant 0 : index
    %22 = vector.load %arg1[%c0_11, %c2, %c0_12] : memref<1x3x128xf32, #tpu.memory_space<vmem>>, vector<1x1x128xf32>
    %23 = vector.shape_cast %22 : vector<1x1x128xf32> to vector<128xf32>
    %24 = vector.shape_cast %23 : vector<128xf32> to vector<1x128xf32>
    %25 = vector.broadcast %21 : vector<8x1xf32> to vector<8x128xf32>
    %26 = vector.broadcast %24 : vector<1x128xf32> to vector<8x128xf32>
    %27 = arith.mulf %25, %26 : vector<8x128xf32>
    %28 = arith.addf %19, %27 : vector<8x128xf32>
    %cst = arith.constant dense<0.000000e+00> : vector<8xf32>
    %29 = vector.multi_reduction <add>, %28, %cst [1] : vector<8x128xf32> to vector<8xf32>
    %30 = vector.shape_cast %29 : vector<8xf32> to vector<8x1xf32>
    %cst_13 = arith.constant 6.250000e-02 : f32
    %31 = vector.broadcast %cst_13 : f32 to vector<8x1xf32>
    %32 = arith.mulf %30, %31 : vector<8x1xf32>
    %33 = arith.mulf %28, %28 : vector<8x128xf32>
    %cst_14 = arith.constant dense<0.000000e+00> : vector<8xf32>
    %34 = vector.multi_reduction <add>, %33, %cst_14 [1] : vector<8x128xf32> to vector<8xf32>
    %35 = vector.shape_cast %34 : vector<8xf32> to vector<8x1xf32>
    %cst_15 = arith.constant 6.250000e-02 : f32
    %36 = vector.broadcast %cst_15 : f32 to vector<8x1xf32>
    %37 = arith.mulf %35, %36 : vector<8x1xf32>
    %38 = arith.mulf %32, %32 : vector<8x1xf32>
    %39 = arith.subf %37, %38 : vector<8x1xf32>
    %cst_16 = arith.constant 0.000000e+00 : f32
    %40 = vector.broadcast %cst_16 : f32 to vector<8x1xf32>
    %41 = arith.maximumf %39, %40 : vector<8x1xf32>
    %42 = vector.broadcast %32 : vector<8x1xf32> to vector<8x128xf32>
    %43 = arith.subf %28, %42 : vector<8x128xf32>
    %cst_17 = arith.constant 9.99999974E-6 : f32
    %44 = vector.broadcast %cst_17 : f32 to vector<8x1xf32>
    %45 = arith.addf %41, %44 : vector<8x1xf32>
    %46 = math.rsqrt %45 : vector<8x1xf32>
    %47 = vector.broadcast %46 : vector<8x1xf32> to vector<8x128xf32>
    %48 = arith.mulf %43, %47 : vector<8x128xf32>
    %49 = vector.broadcast %1 : vector<8x1xf32> to vector<8x128xf32>
    %50 = arith.mulf %48, %49 : vector<8x128xf32>
    %51 = vector.broadcast %2 : vector<8x1xf32> to vector<8x128xf32>
    %52 = arith.addf %50, %51 : vector<8x128xf32>
    %cst_18 = arith.constant 5.000000e-01 : f32
    %53 = vector.broadcast %cst_18 : f32 to vector<8x128xf32>
    %54 = arith.mulf %53, %52 : vector<8x128xf32>
    %cst_19 = arith.constant 4.471500e-02 : f32
    %55 = vector.broadcast %cst_19 : f32 to vector<8x128xf32>
    %56 = arith.mulf %55, %52 : vector<8x128xf32>
    %57 = arith.mulf %56, %52 : vector<8x128xf32>
    %58 = arith.mulf %57, %52 : vector<8x128xf32>
    %59 = arith.addf %52, %58 : vector<8x128xf32>
    %cst_20 = arith.constant 0.797884583 : f32
    %60 = vector.broadcast %cst_20 : f32 to vector<8x128xf32>
    %61 = arith.mulf %60, %59 : vector<8x128xf32>
    %62 = math.tanh %61 : vector<8x128xf32>
    %cst_21 = arith.constant 1.000000e+00 : f32
    %63 = vector.broadcast %cst_21 : f32 to vector<8x128xf32>
    %64 = arith.addf %63, %62 : vector<8x128xf32>
    %65 = arith.mulf %54, %64 : vector<8x128xf32>
    %c0_22 = arith.constant 0 : index
    %c0_23 = arith.constant 0 : index
    %c0_24 = arith.constant 0 : index
    %66 = vector.load %arg5[%c0_22, %c0_23, %c0_24] : memref<1x8x128xf32, #tpu.memory_space<vmem>>, vector<1x8x128xf32>
    %67 = vector.shape_cast %66 : vector<1x8x128xf32> to vector<8x128xf32>
    %68 = vector.shape_cast %65 : vector<8x128xf32> to vector<1x8x128xf32>
    tpu.vector_store %arg5[%c0_22, %c0_23, %c0_24], %68 {strides = array<i32>} : memref<1x8x128xf32, #tpu.memory_space<vmem>>, vector<1x8x128xf32>,
    return
  }
  func.func @transform_0(%arg0: i32) -> (i32, i32, i32) {
    %c0_i32 = arith.constant 0 : i32
    %c0_i32_0 = arith.constant 0 : i32
    %c0_i32_1 = arith.constant 0 : i32
    return %arg0, %c0_i32, %c0_i32_0 : i32, i32, i32
  }
  func.func @transform_1(%arg0: i32) -> (i32, i32, i32) {
    %c0_i32 = arith.constant 0 : i32
    %c0_i32_0 = arith.constant 0 : i32
    %c0_i32_1 = arith.constant 0 : i32
    %c0_i32_2 = arith.constant 0 : i32
    return %c0_i32, %c0_i32_0, %c0_i32_1 : i32, i32, i32
  }
  func.func @transform_2(%arg0: i32) -> (i32, i32) {
    %c0_i32 = arith.constant 0 : i32
    %c0_i32_0 = arith.constant 0 : i32
    %c0_i32_1 = arith.constant 0 : i32
    return %c0_i32, %c0_i32_0 : i32, i32
  }
  func.func @transform_3(%arg0: i32) -> (i32, i32) {
    %c0_i32 = arith.constant 0 : i32
    %c0_i32_0 = arith.constant 0 : i32
    %c0_i32_1 = arith.constant 0 : i32
    return %c0_i32, %c0_i32_0 : i32, i32
  }
  func.func @transform_4(%arg0: i32) -> (i32, i32, i32) {
    %c0_i32 = arith.constant 0 : i32
    %c0_i32_0 = arith.constant 0 : i32
    %c0_i32_1 = arith.constant 0 : i32
    return %arg0, %c0_i32, %c0_i32_0 : i32, i32, i32
  }
}

</mosaic_0001>

<llo_original>
// kernel: tpu_custom_call.1
$region0: #{tpu_custom_call.1}
  #allocation0 [shape = 'u32[]', space=smem, size = 0x4, offset = 0x4, fixed_abs, tag = 'smem constant byte address 0x4 - core index']
  #allocation1 [shape = 'u32[144,128]{1,0:T(1,128)}', space=vmem, size = 0x12000, scoped, tag = 'internal scratch']
  %s0 = inlined_call_operand.vmem [shape: f32[2,3,128], index: 0, kind: input, shape index: {}]
  %s1 = inlined_call_operand.vmem [shape: f32[3,8,1], index: 1, kind: input, shape index: {}]
  %s2 = inlined_call_operand.vmem [shape: f32[8,1], index: 2, kind: input, shape index: {}]
  %s3 = inlined_call_operand.vmem [shape: f32[8,1], index: 3, kind: input, shape index: {}]
  %s4 = inlined_call_operand.hbm [shape: f32[2,8,128], index: 4, kind: output, shape index: {}]
  %s5 = sld [smem:[#allocation0]]
  $region49: #{tpu_custom_call.1} parent=0
    _
  %s7 = ssub.s32 1, %s5
  %s8 = scalar_select 0, %s7, %s5
  $region1: #{tpu_custom_call.1} parent=0
    #allocation2 [shape = 'u8[8192]{0}', space=vmem, size = 0x2000, scoped, tag = 'output window, operand 0']
    #allocation3 [shape = 's32[2]{0}', space=sflag, size = 0x8, scoped, tag = 'scoped memory for tpu_custom_call.1']
    %9 = vsyncpa [#allocation3], 0
    %s10 = scalar_lea.sflag [#allocation3], 1
    %11 = vsyncpa %s10, 0
    loop: start=0, step=1, limit=4
    $region2: #{tpu_custom_call.1} parent=1 // loop_pre_header
      _
    $region3: #{tpu_custom_call.1} parent=1 // loop_header
      %s13 = sphi 0, %s17
      %p14 = scmp.ge.s32.totalorder %s13, 4
      %s23 = sphi 0, %s25
      %s26 = sphi 0, %s23
      %s27 = sphi 0, %s26
      %s43 = sphi 0, %s27
      %s47 = sphi 0, %s47
      %s49 = sphi 0, %s47
      %s50 = sphi 0, %s49
      %s64 = sphi 0, %s50
      %s68 = sphi 0, %s68
      %s70 = sphi 0, %s68
      %s71 = sphi 0, %s70
      %s85 = sphi 0, %s71
      %s89 = sphi 0, %s89
      %s91 = sphi 0, %s89
      %s92 = sphi 0, %s91
      %s106 = sphi 0, %s92
      %s112 = sphi 0, %s114
      %s115 = sphi 0, %s112
      %s116 = sphi 0, %s115
      %s132 = sphi 0, %s116
    $region4: #{tpu_custom_call.1} parent=1 // loop_header_branch
      %16 = sbr.rel (%p14) target = $region8
    $region5: #{tpu_custom_call.1} parent=1 // loop_body
      %s18 = ssub.s32 %s13, 1
      %s19 = ssub.s32 %s13, 2
      %s20 = sadd.s32 %s13, 1
      %s21 = ssub.s32 %s13, %s20
      %p22 = scmp.eq.s32.totalorder %s21, 0
      %s24 = sadd.s32 %s23, 1
      %s25 = scalar_select %p22, %s23, %s24
      %p28 = pneg %p22
      %p29 = scmp.eq.s32.totalorder %s13, 1
      %p30 = por %p28, %p29
      %p31 = scmp.ne.s32.totalorder %s23, %s26
      %p32 = scmp.eq.s32.totalorder %s13, 0
      %p33 = por %p31, %p32
      %p34 = scmp.ne.s32.totalorder %s23, %s26
      %p35 = scmp.eq.s32.totalorder %s18, 1
      %p36 = por %p34, %p35
      %p37 = scmp.ne.s32.totalorder %s26, %s27
      %p38 = scmp.eq.s32.totalorder %s18, 0
      %p39 = por %p37, %p38
      %p40 = scmp.ne.s32.totalorder %s26, %s27
      %p41 = scmp.eq.s32.totalorder %s19, 1
      %p42 = por %p40, %p41
      %p44 = scmp.ne.s32.totalorder %s27, %s43
      %p45 = scmp.eq.s32.totalorder %s19, 0
      %p46 = por %p44, %p45
      %s48 = sadd.s32 %s47, 1
      %p51 = scmp.eq.s32.totalorder %s13, 1
      %p52 = scmp.ne.s32.totalorder %s47, %s49
      %p53 = scmp.eq.s32.totalorder %s13, 0
      %p54 = por %p52, %p53
      %p55 = scmp.ne.s32.totalorder %s47, %s49
      %p56 = scmp.eq.s32.totalorder %s18, 1
      %p57 = por %p55, %p56
      %p58 = scmp.ne.s32.totalorder %s49, %s50
      %p59 = scmp.eq.s32.totalorder %s18, 0
      %p60 = por %p58, %p59
      %p61 = scmp.ne.s32.totalorder %s49, %s50
      %p62 = scmp.eq.s32.totalorder %s19, 1
      %p63 = por %p61, %p62
      %p65 = scmp.ne.s32.totalorder %s50, %s64
      %p66 = scmp.eq.s32.totalorder %s19, 0
      %p67 = por %p65, %p66
      %s69 = sadd.s32 %s68, 1
      %p72 = scmp.eq.s32.totalorder %s13, 1
      %p73 = scmp.ne.s32.totalorder %s68, %s70
      %p74 = scmp.eq.s32.totalorder %s13, 0
      %p75 = por %p73, %p74
      %p76 = scmp.ne.s32.totalorder %s68, %s70
      %p77 = scmp.eq.s32.totalorder %s18, 1
      %p78 = por %p76, %p77
      %p79 = scmp.ne.s32.totalorder %s70, %s71
      %p80 = scmp.eq.s32.totalorder %s18, 0
      %p81 = por %p79, %p80
      %p82 = scmp.ne.s32.totalorder %s70, %s71
      %p83 = scmp.eq.s32.totalorder %s19, 1
      %p84 = por %p82, %p83
      %p86 = scmp.ne.s32.totalorder %s71, %s85
      %p87 = scmp.eq.s32.totalorder %s19, 0
      %p88 = por %p86, %p87
      %s90 = sadd.s32 %s89, 1
      %p93 = scmp.eq.s32.totalorder %s13, 1
      %p94 = scmp.ne.s32.totalorder %s89, %s91
      %p95 = scmp.eq.s32.totalorder %s13, 0
      %p96 = por %p94, %p95
      %p97 = scmp.ne.s32.totalorder %s89, %s91
      %p98 = scmp.eq.s32.totalorder %s18, 1
      %p99 = por %p97, %p98
      %p100 = scmp.ne.s32.totalorder %s91, %s92
      %p101 = scmp.eq.s32.totalorder %s18, 0
      %p102 = por %p100, %p101
      %p103 = scmp.ne.s32.totalorder %s91, %s92
      %p104 = scmp.eq.s32.totalorder %s19, 1
      %p105 = por %p103, %p104
      %p107 = scmp.ne.s32.totalorder %s92, %s106
      %p108 = scmp.eq.s32.totalorder %s19, 0
      %p109 = por %p107, %p108
      %s110 = ssub.s32 %s13, %s20
      %p111 = scmp.eq.s32.totalorder %s110, 0
      %s113 = sadd.s32 %s112, 1
      %s114 = scalar_select %p111, %s112, %s113
      %p117 = pneg %p111
      %p118 = scmp.eq.s32.totalorder %s13, 1
      %p119 = por %p117, %p118
      %p120 = scmp.ne.s32.totalorder %s112, %s115
      %p121 = scmp.eq.s32.totalorder %s13, 0
      %p122 = por %p120, %p121
      %p123 = scmp.ne.s32.totalorder %s112, %s115
      %p124 = scmp.eq.s32.totalorder %s18, 1
      %p125 = por %p123, %p124
      %p126 = scmp.ne.s32.totalorder %s115, %s116
      %p127 = scmp.eq.s32.totalorder %s18, 0
      %p128 = por %p126, %p127
      %p129 = scmp.ne.s32.totalorder %s115, %s116
      %p130 = scmp.eq.s32.totalorder %s19, 1
      %p131 = por %p129, %p130
      %p133 = scmp.ne.s32.totalorder %s116, %s132
      %p134 = scmp.eq.s32.totalorder %s19, 0
      %p135 = por %p133, %p134
      %p136 = scmp.le.s32.totalorder 1, %s13
      %p137 = scmp.lt.s32.totalorder %s13, 3
      %p138 = pnand %p136, %p137
      %p139 = pneg %p138
      // Predicated region
      $region9: #{tpu_custom_call.1} parent=5 // pred_check
        _
      $region10: #{tpu_custom_call.1} parent=5 // pred_check_branch
        %141 = sbr.rel (%p138) target = $region12
      $region11: #{tpu_custom_call.1} parent=5 // pred_region
        %s142 = ssub.s32 %s13, 1
        // Predicated region
        $region13: #{tpu_custom_call.1} parent=11 // pred_check
          %p143 = pneg %p60
        $region14: #{tpu_custom_call.1} parent=11 // pred_check_branch
          %145 = sbr.rel (%p143) target = $region16
        $region15: #{tpu_custom_call.1} parent=11 // pred_region
          _
        $region16: #{tpu_custom_call.1} parent=11 // pred_fallthru
          _
        // Predicated region
        $region17: #{tpu_custom_call.1} parent=11 // pred_check
          %p146 = pneg %p81
        $region18: #{tpu_custom_call.1} parent=11 // pred_check_branch
          %148 = sbr.rel (%p146) target = $region20
        $region19: #{tpu_custom_call.1} parent=11 // pred_region
          _
        $region20: #{tpu_custom_call.1} parent=11 // pred_fallthru
          _
        // Predicated region
        $region21: #{tpu_custom_call.1} parent=11 // pred_check
          %p149 = pneg %p102
        $region22: #{tpu_custom_call.1} parent=11 // pred_check_branch
          %151 = sbr.rel (%p149) target = $region24
        $region23: #{tpu_custom_call.1} parent=11 // pred_region
          _
        $region24: #{tpu_custom_call.1} parent=11 // pred_fallthru
          _
      $region12: #{tpu_custom_call.1} parent=5 // pred_fallthru
        _
      %p152 = scmp.lt.s32.totalorder %s13, 2
      // Predicated region
      $region25: #{tpu_custom_call.1} parent=5 // pred_check
        %p153 = pneg %p152
      $region26: #{tpu_custom_call.1} parent=5 // pred_check_branch
        %155 = sbr.rel (%p153) target = $region28
      $region27: #{tpu_custom_call.1} parent=5 // pred_region
        // Predicated region
        $region29: #{tpu_custom_call.1} parent=27 // pred_check
          %p156 = pneg %p33
        $region30: #{tpu_custom_call.1} parent=27 // pred_check_branch
          %158 = sbr.rel (%p156) target = $region32
        $region31: #{tpu_custom_call.1} parent=27 // pred_region
          %p159 = scmp.lt.s32.totalorder %s13, 1
          %s160 = scalar_select %p159, %s13, 1
          %s161 = smul.addr %s160, 4
          %s162 = scalar_lea.vmem %s0, %s161
        $region32: #{tpu_custom_call.1} parent=27 // pred_fallthru
          _
      $region28: #{tpu_custom_call.1} parent=5 // pred_fallthru
        _
      %p163 = scmp.le.s32.totalorder 1, %s13
      %p164 = scmp.lt.s32.totalorder %s13, 3
      %p165 = pnand %p163, %p164
      %p166 = pneg %p165
      // Predicated region
      $region33: #{tpu_custom_call.1} parent=5 // pred_check
        _
      $region34: #{tpu_custom_call.1} parent=5 // pred_check_branch
        %168 = sbr.rel (%p165) target = $region36
      $region35: #{tpu_custom_call.1} parent=5 // pred_region
        %s169 = ssub.s32 %s13, 1
        %p170 = scmp.lt.s32.totalorder %s18, 1
        %s171 = scalar_select %p170, %s18, 1
        %s172 = smul.addr %s171, 4
        %s173 = scalar_lea.vmem %s0, %s172
        %p174 = pneg %p39
        %p175 = pneg %p36
        %p176 = pneg %p60
        %p177 = pneg %p57
        %p178 = pneg %p81
        %p179 = pneg %p78
        %p180 = pneg %p102
        %p181 = pneg %p99
        %p182 = pneg %p128
        %p183 = pneg %p125
        %s184 = sand.u32 %s115, 1
        %s185 = scalar_lea.sflag [#allocation3], %s184
        %s186 = sand.u32 %s115, 1
        %s187 = smul.addr %s186, 8
        %s188 = scalar_lea.vmem [#allocation2], %s187
        %p189 = scmp.lt.s32.totalorder %s18, 1
        %s190 = scalar_select %p189, %s18, 1
        %s191 = smul.addr %s190, 4
        %s192 = scalar_lea.vmem %s0, %s191
        %v193 = vld [vmem:[%s1] sm:$0xff]
        %v194 = vld [vmem:[%s1 + $0x8] sm:$0xff]
        %v195 = vld [vmem:[%s1 + $0x10] sm:$0xff]
        %v196 = vld [vmem:[%s2] sm:$0xff]
        %v197 = vld [vmem:[%s3] sm:$0xff]
        %v198 = vld [vmem:[%s192] sm:$0x1]
        %200 = vset.pattern.permute.xlu0 0
        %201 = vperm.xlu0 %200, %v193
        %v202 = vpop.permute.xlu0 %201
        %v204 = vlaneseq
        %v205 = vshrl.u32 %v204, 7
        %v206 = vsub.s32 0, %v205
        %v207 = vrot.slane %v198, %v206
        %v208 = vmul.f32 %v202, %v207
        %v209 = vld [vmem:[%s192 + $0x1] sm:$0x1]
        %211 = vset.pattern.permute.xlu0 0
        %212 = vperm.xlu0 %211, %v194
        %v213 = vpop.permute.xlu0 %212
        %v215 = vlaneseq
        %v216 = vshrl.u32 %v215, 7
        %v217 = vsub.s32 0, %v216
        %v218 = vrot.slane %v209, %v217
        %v219 = vmul.f32 %v213, %v218
        %v220 = vadd.f32 %v208, %v219
        %v221 = vld [vmem:[%s192 + $0x2] sm:$0x1]
        %223 = vset.pattern.permute.xlu0 0
        %224 = vperm.xlu0 %223, %v195
        %v225 = vpop.permute.xlu0 %224
        %v227 = vlaneseq
        %v228 = vshrl.u32 %v227, 7
        %v229 = vsub.s32 0, %v228
        %v230 = vrot.slane %v221, %v229
        %v231 = vmul.f32 %v225, %v230
        %v232 = vadd.f32 %v220, %v231
        %233 = vadd.xlane.f32.xlu0 %v232
        %v234 = vpop.xlane.xlu0 %233
        %v235 = vmul.f32 %v234, 0.0625
        %v236 = vmul.f32 %v232, %v232
        %237 = vadd.xlane.f32.xlu0 %v236
        %v238 = vpop.xlane.xlu0 %237
        %v239 = vmul.f32 %v238, 0.0625
        %v240 = vmul.f32 %v235, %v235
        %v241 = vsub.f32 %v239, %v240
        %v242 = vmax.f32 %v241, 0.0
        %v243 = vsub.f32 %v232, %v235
        %v244 = vadd.f32 %v242, 1e-05
        %v245 = vrsqrt.pop %v244
        %v246 = vmul.f32 %v243, %v245
        %248 = vset.pattern.permute.xlu0 0
        %249 = vperm.xlu0 %248, %v196
        %v250 = vpop.permute.xlu0 %249
        %v252 = vmul.f32 %v246, %v250
        %254 = vset.pattern.permute.xlu0 0
        %255 = vperm.xlu0 %254, %v197
        %v256 = vpop.permute.xlu0 %255
        %v258 = vadd.f32 %v252, %v256
        %v259 = vmul.f32 %v258, 0.5
        %v260 = vmul.f32 %v258, 0.044715
        %v261 = vmul.f32 %v260, %v258
        %v262 = vmul.f32 %v261, %v258
        %v263 = vadd.f32 %v258, %v262
        %v264 = vmul.f32 %v263, 0.7978846
        %v265 = vtanh.pop %v264
        %v266 = vadd.f32 %v265, 1.0
        %v267 = vmul.f32 %v259, %v266
        %268 = vst [vmem:[%s188] sm:$0xff] %v267
        %s269 = sand.u32 %s115, 1
        %s270 = scalar_lea.sflag [#allocation3], %s269
        %s271 = sand.u32 %s115, 1
        %s272 = smul.addr %s271, 8
        %s273 = scalar_lea.vmem [#allocation2], %s272
        // Predicated region
        $region37: #{tpu_custom_call.1} parent=35 // pred_check
          %p274 = pneg %p125
        $region38: #{tpu_custom_call.1} parent=35 // pred_check_branch
          %276 = sbr.rel (%p274) target = $region40
        $region39: #{tpu_custom_call.1} parent=35 // pred_region
          %s278 = ssub.s32 128, 128
          %279 = vsyncadd %s270, %s278
          %s280 = smul.addr %s18, 128
          %s281 = scalar_lea.hbm %s4, %s280
          %s283 = sshll.u32 %s273, 4
          %s284 = int_to_ptr.vmem [resolvable:$true] %s283
          %286 = dma.vmem_to_hbm [thread:$0]  %s284, 128, %s281, %s270
        $region40: #{tpu_custom_call.1} parent=35 // pred_fallthru
          _
      $region36: #{tpu_custom_call.1} parent=5 // pred_fallthru
        _
      %p287 = scmp.le.s32.totalorder 2, %s13
      // Predicated region
      $region41: #{tpu_custom_call.1} parent=5 // pred_check
        %p288 = pneg %p287
      $region42: #{tpu_custom_call.1} parent=5 // pred_check_branch
        %290 = sbr.rel (%p288) target = $region44
      $region43: #{tpu_custom_call.1} parent=5 // pred_region
        %s291 = ssub.s32 %s13, 2
        // Predicated region
        $region45: #{tpu_custom_call.1} parent=43 // pred_check
          %p292 = pneg %p131
        $region46: #{tpu_custom_call.1} parent=43 // pred_check_branch
          %294 = sbr.rel (%p292) target = $region48
        $region47: #{tpu_custom_call.1} parent=43 // pred_region
          %s295 = sand.u32 %s116, 1
          %s296 = scalar_lea.sflag [#allocation3], %s295
          %s297 = sand.u32 %s116, 1
          %s298 = smul.addr %s297, 8
          %s299 = scalar_lea.vmem [#allocation2], %s298
          %300 = dma.done %s296, 128
        $region48: #{tpu_custom_call.1} parent=43 // pred_fallthru
          _
      $region44: #{tpu_custom_call.1} parent=5 // pred_fallthru
        _
    $region6: #{tpu_custom_call.1} parent=1 // loop_footer
      %s17 = sadd.s32 1, %s13
    $region7: #{tpu_custom_call.1} parent=1 // loop_footer_branch
      %12 = sbr.rel target = $region3
    $region8: #{tpu_custom_call.1} parent=1 // loop_exit
      _
    %301 = vsyncpa [#allocation3], 1
    %s302 = scalar_lea.sflag [#allocation3], 1
    %303 = vsyncpa %s302, 1

</llo_original>
